<compile_context>
chip_gen: v5e
topology: v5e:2x2
jax: 0.10.0
libtpu: 0.0.40
codegen_flags: <defaults>
</compile_context>

<pallas_src>
import jax
import jax.numpy as jnp
from jax.experimental import pallas as pl
from jax.experimental.pallas import tpu as pltpu

LANE = 128
SUBLANE = 8


def _round_up(a, m):
    return (a + m - 1) // m * m


def dqn_kernel(x_ref, w1_ref, b1_ref, w2_ref, b2_ref, w3_ref, b3_ref,
               w4_ref, b4_ref, out_ref):
    # x tile is already f32; cast to bf16 only at the MXU inputs, accumulate
    # in f32, and keep all elementwise math (bias add, ReLU) in f32.
    x = x_ref[...]

    h = jnp.dot(x.astype(jnp.bfloat16), w1_ref[...],
                preferred_element_type=jnp.float32) + b1_ref[...]
    h = jnp.maximum(h, 0.0)

    h = jnp.dot(h.astype(jnp.bfloat16), w2_ref[...],
                preferred_element_type=jnp.float32) + b2_ref[...]
    h = jnp.maximum(h, 0.0)

    h = jnp.dot(h.astype(jnp.bfloat16), w3_ref[...],
                preferred_element_type=jnp.float32) + b3_ref[...]
    h = jnp.maximum(h, 0.0)

    out = jnp.dot(h.astype(jnp.bfloat16), w4_ref[...],
                  preferred_element_type=jnp.float32) + b4_ref[...]
    out_ref[...] = out.astype(out_ref.dtype)


def dqn_forward(x, params, *, max_batch_tile=1024):
    """x: (B, input_dim) f32.  params: dict of (in,out) f32 weights, (1,out) f32 biases."""
    B, input_dim = x.shape
    h1 = params["w1"].shape[1]
    h2 = params["w2"].shape[1]
    h3 = params["w3"].shape[1]
    out_dim = params["w4"].shape[1]
    out_pad = _round_up(out_dim, LANE)          # lane-dense output block

    # Batch tile: multiple of 8 (sublane), capped so x/out tiles stay well
    # within the scoped-VMEM default even on v5e; pad B to a multiple of TB.
    TB = _round_up(min(max_batch_tile, _round_up(B, SUBLANE)), SUBLANE)
    B_pad = _round_up(B, TB)
    if B_pad != B:
        x = jnp.pad(x, ((0, B_pad - B), (0, 0)))
    num_tiles = B_pad // TB

    # Weights in bf16 (native MXU rate, half the VMEM footprint); biases f32.
    w1 = params["w1"].astype(jnp.bfloat16)
    w2 = params["w2"].astype(jnp.bfloat16)
    w3 = params["w3"].astype(jnp.bfloat16)
    w4 = jnp.pad(params["w4"],
                 ((0, 0), (0, out_pad - out_dim))).astype(jnp.bfloat16)
    b1, b2, b3 = params["b1"], params["b2"], params["b3"]
    b4 = jnp.pad(params["b4"], ((0, 0), (0, out_pad - out_dim)))

    # Weights/biases: whole-array block, constant index_map -> VMEM-resident
    # across all batch tiles.
    resident = lambda a: pl.BlockSpec(a.shape, lambda i: (0,) * a.ndim)

    flops = 2 * B_pad * (input_dim * h1 + h1 * h2 + h2 * h3 + h3 * out_pad)
    bytes_accessed = (B_pad * input_dim * 4 + B_pad * out_pad * 4
                      + 2 * (w1.size + w2.size + w3.size + w4.size)
                      + 4 * (b1.size + b2.size + b3.size + b4.size))

    out_padded = pl.pallas_call(
        dqn_kernel,
        out_shape=jax.ShapeDtypeStruct((B_pad, out_pad), x.dtype),
        grid_spec=pltpu.PrefetchScalarGridSpec(
            num_scalar_prefetch=0,
            grid=(num_tiles,),
            in_specs=[
                pl.BlockSpec((TB, input_dim), lambda i: (i, 0)),
                resident(w1), resident(b1),
                resident(w2), resident(b2),
                resident(w3), resident(b3),
                resident(w4), resident(b4),
            ],
            out_specs=pl.BlockSpec((TB, out_pad), lambda i: (i, 0)),
        ),
        compiler_params=pltpu.CompilerParams(
            dimension_semantics=("parallel",)),
        cost_estimate=pl.CostEstimate(
            flops=flops, transcendentals=0, bytes_accessed=bytes_accessed),
    )(x, w1, b1, w2, b2, w3, b3, w4, b4)

    # Strip batch pad and the lane-dense output pad outside the kernel.
    return out_padded[:B, :out_dim]


def init_params(key, input_dim, output_dim):
    """Deterministic init mirroring nn.Linear's U(-1/sqrt(fan_in), 1/sqrt(fan_in))."""
    dims = [(input_dim, 256), (256, 128), (128, 128), (128, output_dim)]
    params = {}
    for idx, (fan_in, fan_out) in enumerate(dims, start=1):
        key, kw, kb = jax.random.split(key, 3)
        bound = 1.0 / jnp.sqrt(jnp.float32(fan_in))
        params[f"w{idx}"] = jax.random.uniform(
            kw, (fan_in, fan_out), jnp.float32, minval=-bound, maxval=bound)
        params[f"b{idx}"] = jax.random.uniform(
            kb, (1, fan_out), jnp.float32, minval=-bound, maxval=bound)
    return params


def dqn_reference(x, p):
    h = jnp.maximum(x @ p["w1"] + p["b1"], 0.0)
    h = jnp.maximum(h @ p["w2"] + p["b2"], 0.0)
    h = jnp.maximum(h @ p["w3"] + p["b3"], 0.0)
    return h @ p["w4"] + p["b4"]


if __name__ == "__main__":
    key = jax.random.PRNGKey(0)
    input_dim, output_dim, batch = 16, 8, 2

    kx, kp = jax.random.split(key)
    x = jax.random.normal(kx, (batch, input_dim), jnp.float32)
    params = init_params(kp, input_dim, output_dim)

    out = jax.block_until_ready(dqn_forward(x, params))
    ref = dqn_reference(x, params)

    assert out.shape == (batch, output_dim)
    # bf16 MXU inputs (f32 accumulation) -> slightly looser tolerance.
    assert jnp.allclose(out, ref, atol=2e-2, rtol=2e-2), (
        f"max abs err {jnp.max(jnp.abs(out - ref))}")
    print("KERNEL_OK")
</pallas_src>

<mosaic_0001>
module attributes {stable_mosaic.version = 11 : i64} {
  func.func @dqn_kernel(%arg0: i32, %arg1: memref<8x16xf32, #tpu.memory_space<vmem>>, %arg2: memref<16x256xbf16, #tpu.memory_space<vmem>>, %arg3: memref<1x256xf32, #tpu.memory_space<vmem>>, %arg4: memref<256x128xbf16, #tpu.memory_space<vmem>>, %arg5: memref<1x128xf32, #tpu.memory_space<vmem>>, %arg6: memref<128x128xbf16, #tpu.memory_space<vmem>>, %arg7: memref<1x128xf32, #tpu.memory_space<vmem>>, %arg8: memref<128x128xbf16, #tpu.memory_space<vmem>>, %arg9: memref<1x128xf32, #tpu.memory_space<vmem>>, %arg10: memref<8x128xf32, #tpu.memory_space<vmem>>) attributes {dimension_semantics = [#tpu.dimension_semantics<parallel>], iteration_bounds = array<i64: 1>, scalar_prefetch = 0 : i64, scratch_operands = 0 : i64, tpu.core_type = #tpu.core_type<tc>, window_params = [{transform_indices = @transform_0, window_bounds = array<i64: 8, 16>}, {pipeline_mode = #tpu.pipeline_mode<synchronous>, transform_indices = @transform_1, window_bounds = array<i64: 16, 256>}, {pipeline_mode = #tpu.pipeline_mode<synchronous>, transform_indices = @transform_2, window_bounds = array<i64: 1, 256>}, {pipeline_mode = #tpu.pipeline_mode<synchronous>, transform_indices = @transform_3, window_bounds = array<i64: 256, 128>}, {pipeline_mode = #tpu.pipeline_mode<synchronous>, transform_indices = @transform_4, window_bounds = array<i64: 1, 128>}, {pipeline_mode = #tpu.pipeline_mode<synchronous>, transform_indices = @transform_5, window_bounds = array<i64: 128, 128>}, {pipeline_mode = #tpu.pipeline_mode<synchronous>, transform_indices = @transform_6, window_bounds = array<i64: 1, 128>}, {pipeline_mode = #tpu.pipeline_mode<synchronous>, transform_indices = @transform_7, window_bounds = array<i64: 128, 128>}, {pipeline_mode = #tpu.pipeline_mode<synchronous>, transform_indices = @transform_8, window_bounds = array<i64: 1, 128>}, {transform_indices = @transform_9, window_bounds = array<i64: 8, 128>}]} {
    %c0 = arith.constant 0 : index
    %c0_0 = arith.constant 0 : index
    %0 = vector.load %arg1[%c0, %c0_0] : memref<8x16xf32, #tpu.memory_space<vmem>>, vector<8x16xf32>
    %1 = arith.truncf %0 : vector<8x16xf32> to vector<8x16xbf16>
    %c0_1 = arith.constant 0 : index
    %c0_2 = arith.constant 0 : index
    %2 = vector.load %arg2[%c0_1, %c0_2] : memref<16x256xbf16, #tpu.memory_space<vmem>>, vector<16x256xbf16>
    %cst = arith.constant dense<0.000000e+00> : vector<8x256xf32>
    %3 = tpu.matmul %1, %2, %cst {dimension_numbers = #tpu.dot_dimension_numbers<[1], [0], [0], [1], [0, 0, 1, 1], [], []>} : vector<8x16xbf16>, vector<16x256xbf16>, vector<8x256xf32> -> vector<8x256xf32>
    %c0_3 = arith.constant 0 : index
    %c0_4 = arith.constant 0 : index
    %4 = vector.load %arg3[%c0_3, %c0_4] : memref<1x256xf32, #tpu.memory_space<vmem>>, vector<1x256xf32>
    %5 = vector.broadcast %4 : vector<1x256xf32> to vector<8x256xf32>
    %6 = arith.addf %3, %5 : vector<8x256xf32>
    %cst_5 = arith.constant 0.000000e+00 : f32
    %7 = vector.broadcast %cst_5 : f32 to vector<8x256xf32>
    %8 = arith.maximumf %6, %7 : vector<8x256xf32>
    %9 = arith.truncf %8 : vector<8x256xf32> to vector<8x256xbf16>
    %c0_6 = arith.constant 0 : index
    %c0_7 = arith.constant 0 : index
    %10 = vector.load %arg4[%c0_6, %c0_7] : memref<256x128xbf16, #tpu.memory_space<vmem>>, vector<256x128xbf16>
    %cst_8 = arith.constant dense<0.000000e+00> : vector<8x128xf32>
    %11 = tpu.matmul %9, %10, %cst_8 {dimension_numbers = #tpu.dot_dimension_numbers<[1], [0], [0], [1], [0, 0, 1, 1], [], []>} : vector<8x256xbf16>, vector<256x128xbf16>, vector<8x128xf32> -> vector<8x128xf32>
    %c0_9 = arith.constant 0 : index
    %c0_10 = arith.constant 0 : index
    %12 = vector.load %arg5[%c0_9, %c0_10] : memref<1x128xf32, #tpu.memory_space<vmem>>, vector<1x128xf32>
    %13 = vector.broadcast %12 : vector<1x128xf32> to vector<8x128xf32>
    %14 = arith.addf %11, %13 : vector<8x128xf32>
    %cst_11 = arith.constant 0.000000e+00 : f32
    %15 = vector.broadcast %cst_11 : f32 to vector<8x128xf32>
    %16 = arith.maximumf %14, %15 : vector<8x128xf32>
    %17 = arith.truncf %16 : vector<8x128xf32> to vector<8x128xbf16>
    %c0_12 = arith.constant 0 : index
    %c0_13 = arith.constant 0 : index
    %18 = vector.load %arg6[%c0_12, %c0_13] : memref<128x128xbf16, #tpu.memory_space<vmem>>, vector<128x128xbf16>
    %cst_14 = arith.constant dense<0.000000e+00> : vector<8x128xf32>
    %19 = tpu.matmul %17, %18, %cst_14 {dimension_numbers = #tpu.dot_dimension_numbers<[1], [0], [0], [1], [0, 0, 1, 1], [], []>} : vector<8x128xbf16>, vector<128x128xbf16>, vector<8x128xf32> -> vector<8x128xf32>
    %c0_15 = arith.constant 0 : index
    %c0_16 = arith.constant 0 : index
    %20 = vector.load %arg7[%c0_15, %c0_16] : memref<1x128xf32, #tpu.memory_space<vmem>>, vector<1x128xf32>
    %21 = vector.broadcast %20 : vector<1x128xf32> to vector<8x128xf32>
    %22 = arith.addf %19, %21 : vector<8x128xf32>
    %cst_17 = arith.constant 0.000000e+00 : f32
    %23 = vector.broadcast %cst_17 : f32 to vector<8x128xf32>
    %24 = arith.maximumf %22, %23 : vector<8x128xf32>
    %25 = arith.truncf %24 : vector<8x128xf32> to vector<8x128xbf16>
    %c0_18 = arith.constant 0 : index
    %c0_19 = arith.constant 0 : index
    %26 = vector.load %arg8[%c0_18, %c0_19] : memref<128x128xbf16, #tpu.memory_space<vmem>>, vector<128x128xbf16>
    %cst_20 = arith.constant dense<0.000000e+00> : vector<8x128xf32>
    %27 = tpu.matmul %25, %26, %cst_20 {dimension_numbers = #tpu.dot_dimension_numbers<[1], [0], [0], [1], [0, 0, 1, 1], [], []>} : vector<8x128xbf16>, vector<128x128xbf16>, vector<8x128xf32> -> vector<8x128xf32>
    %c0_21 = arith.constant 0 : index
    %c0_22 = arith.constant 0 : index
    %28 = vector.load %arg9[%c0_21, %c0_22] : memref<1x128xf32, #tpu.memory_space<vmem>>, vector<1x128xf32>
    %29 = vector.broadcast %28 : vector<1x128xf32> to vector<8x128xf32>
    %30 = arith.addf %27, %29 : vector<8x128xf32>
    %c0_23 = arith.constant 0 : index
    %c0_24 = arith.constant 0 : index
    %31 = vector.load %arg10[%c0_23, %c0_24] : memref<8x128xf32, #tpu.memory_space<vmem>>, vector<8x128xf32>
    tpu.vector_store %arg10[%c0_23, %c0_24], %30 {strides = array<i32>} : memref<8x128xf32, #tpu.memory_space<vmem>>, vector<8x128xf32>,
    return
  }
  func.func @transform_0(%arg0: i32) -> (i32, i32) {
    %c0_i32 = arith.constant 0 : i32
    %c0_i32_0 = arith.constant 0 : i32
    return %arg0, %c0_i32 : i32, i32
  }
  func.func @transform_1(%arg0: i32) -> (i32, i32) {
    %c0_i32 = arith.constant 0 : i32
    %c0_i32_0 = arith.constant 0 : i32
    %c0_i32_1 = arith.constant 0 : i32
    return %c0_i32, %c0_i32_0 : i32, i32
  }
  func.func @transform_2(%arg0: i32) -> (i32, i32) {
    %c0_i32 = arith.constant 0 : i32
    %c0_i32_0 = arith.constant 0 : i32
    %c0_i32_1 = arith.constant 0 : i32
    return %c0_i32, %c0_i32_0 : i32, i32
  }
  func.func @transform_3(%arg0: i32) -> (i32, i32) {
    %c0_i32 = arith.constant 0 : i32
    %c0_i32_0 = arith.constant 0 : i32
    %c0_i32_1 = arith.constant 0 : i32
    return %c0_i32, %c0_i32_0 : i32, i32
  }
  func.func @transform_4(%arg0: i32) -> (i32, i32) {
    %c0_i32 = arith.constant 0 : i32
    %c0_i32_0 = arith.constant 0 : i32
    %c0_i32_1 = arith.constant 0 : i32
    return %c0_i32, %c0_i32_0 : i32, i32
  }
  func.func @transform_5(%arg0: i32) -> (i32, i32) {
    %c0_i32 = arith.constant 0 : i32
    %c0_i32_0 = arith.constant 0 : i32
    %c0_i32_1 = arith.constant 0 : i32
    return %c0_i32, %c0_i32_0 : i32, i32
  }
  func.func @transform_6(%arg0: i32) -> (i32, i32) {
    %c0_i32 = arith.constant 0 : i32
    %c0_i32_0 = arith.constant 0 : i32
    %c0_i32_1 = arith.constant 0 : i32
    return %c0_i32, %c0_i32_0 : i32, i32
  }
  func.func @transform_7(%arg0: i32) -> (i32, i32) {
    %c0_i32 = arith.constant 0 : i32
    %c0_i32_0 = arith.constant 0 : i32
    %c0_i32_1 = arith.constant 0 : i32
    return %c0_i32, %c0_i32_0 : i32, i32
  }
  func.func @transform_8(%arg0: i32) -> (i32, i32) {
    %c0_i32 = arith.constant 0 : i32
    %c0_i32_0 = arith.constant 0 : i32
    %c0_i32_1 = arith.constant 0 : i32
    return %c0_i32, %c0_i32_0 : i32, i32
  }
  func.func @transform_9(%arg0: i32) -> (i32, i32) {
    %c0_i32 = arith.constant 0 : i32
    %c0_i32_0 = arith.constant 0 : i32
    return %arg0, %c0_i32 : i32, i32
  }
}

</mosaic_0001>

<llo_original>
// kernel: tpu_custom_call.1
$region0: #{tpu_custom_call.1}
  #allocation0 [shape = 'u32[]', space=smem, size = 0x4, offset = 0x4, fixed_abs, tag = 'smem constant byte address 0x4 - core index']
  #allocation1 [shape = 'u32[72,128]{1,0:T(1,128)}', space=vmem, size = 0x9000, scoped, tag = 'internal scratch']
  %s0 = inlined_call_operand.hbm [shape: f32[8,16], index: 0, kind: input, shape index: {}]
  %s1 = inlined_call_operand.hbm [shape: bf16[16,256], index: 1, kind: input, shape index: {}]
  %s2 = inlined_call_operand.hbm [shape: f32[1,256], index: 2, kind: input, shape index: {}]
  %s3 = inlined_call_operand.hbm [shape: bf16[256,128], index: 3, kind: input, shape index: {}]
  %s4 = inlined_call_operand.vmem [shape: f32[1,128], index: 4, kind: input, shape index: {}]
  %s5 = inlined_call_operand.hbm [shape: bf16[128,128], index: 5, kind: input, shape index: {}]
  %s6 = inlined_call_operand.vmem [shape: f32[1,128], index: 6, kind: input, shape index: {}]
  %s7 = inlined_call_operand.hbm [shape: bf16[128,128], index: 7, kind: input, shape index: {}]
  %s8 = inlined_call_operand.vmem [shape: f32[1,128], index: 8, kind: input, shape index: {}]
  %s9 = inlined_call_operand.hbm [shape: f32[8,128], index: 9, kind: output, shape index: {}]
  %s10 = sld [smem:[#allocation0]]
  $region70: #{tpu_custom_call.1} parent=0
    _
  %s12 = ssub.s32 1, %s10
  %s13 = scalar_select 0, %s12, %s10
  $region1: #{tpu_custom_call.1} parent=0
    #allocation2 [shape = 'u8[4096]{0}', space=vmem, size = 0x1000, scoped, tag = 'input window, operand 0, single buffered']
    #allocation3 [shape = 's32[1]{0}', space=sflag, size = 0x4, scoped, tag = 'scoped memory for tpu_custom_call.1']
    #allocation4 [shape = 's32[1]{0}', space=sflag, size = 0x4, scoped, tag = 'scoped memory for tpu_custom_call.1']
    #allocation5 [shape = 'u8[8192]{0}', space=vmem, size = 0x2000, scoped, tag = 'input window, operand 1, single buffered']
    #allocation6 [shape = 's32[1]{0}', space=sflag, size = 0x4, scoped, tag = 'scoped memory for tpu_custom_call.1']
    #allocation7 [shape = 'u8[1024]{0}', space=vmem, size = 0x400, scoped, tag = 'input window, operand 2, single buffered']
    #allocation8 [shape = 'u8[65536]{0}', space=vmem, size = 0x10000, scoped, tag = 'input window, operand 3, single buffered']
    #allocation9 [shape = 's32[1]{0}', space=sflag, size = 0x4, scoped, tag = 'scoped memory for tpu_custom_call.1']
    #allocation10 [shape = 'u8[32768]{0}', space=vmem, size = 0x8000, scoped, tag = 'input window, operand 5, single buffered']
    #allocation11 [shape = 'u8[32768]{0}', space=vmem, size = 0x8000, scoped, tag = 'input window, operand 7, single buffered']
    #allocation12 [shape = 's32[1]{0}', space=sflag, size = 0x4, scoped, tag = 'scoped memory for tpu_custom_call.1']
    #allocation13 [shape = 'u8[4096]{0}', space=vmem, size = 0x1000, scoped, tag = 'output window, operand 0, single buffered']
    %14 = vsyncpa [#allocation3], 0
    %15 = vsyncpa [#allocation6], 0
    %16 = vsyncpa [#allocation9], 0
    %17 = vsyncpa [#allocation12], 0
    %18 = vsyncpa [#allocation4], 0
    // Predicated region
    $region2: #{tpu_custom_call.1} parent=1 // pred_check
      _
    $region3: #{tpu_custom_call.1} parent=1 // pred_check_branch
      %20 = sbr.rel (0) target = $region5
    $region4: #{tpu_custom_call.1} parent=1 // pred_region
      %22 = vsyncadd [#allocation3], 0
      %s24 = sshll.u32 %s0, 4
      %s25 = int_to_ptr.hbm [resolvable:$true] %s24
      %s26 = sshll.u32 [#allocation2], 4
      %s27 = int_to_ptr.vmem [resolvable:$true] %s26
      %29 = dma.hbm_to_vmem [thread:$0]  %s25, 128, %s27, [#allocation3]
    $region5: #{tpu_custom_call.1} parent=1 // pred_fallthru
      _
    // Predicated region
    $region6: #{tpu_custom_call.1} parent=1 // pred_check
      _
    $region7: #{tpu_custom_call.1} parent=1 // pred_check_branch
      %31 = sbr.rel (0) target = $region9
    $region8: #{tpu_custom_call.1} parent=1 // pred_region
      %33 = vsyncadd [#allocation6], 0
      %s34 = sshll.u32 %s1, 4
      %s35 = int_to_ptr.hbm [resolvable:$true] %s34
      %s36 = sshll.u32 [#allocation5], 4
      %s37 = int_to_ptr.vmem [resolvable:$true] %s36
      %42 = dma.hbm_to_vmem [thread:$0]  %s35, 256, %s37, [#allocation6], 128, 128, 8
    $region9: #{tpu_custom_call.1} parent=1 // pred_fallthru
      _
    // Predicated region
    $region10: #{tpu_custom_call.1} parent=1 // pred_check
      _
    $region11: #{tpu_custom_call.1} parent=1 // pred_check_branch
      %44 = sbr.rel (0) target = $region13
    $region12: #{tpu_custom_call.1} parent=1 // pred_region
      %46 = vsyncadd [#allocation6], 0
      %s48 = sshll.u32 %s2, 4
      %s49 = int_to_ptr.hbm [resolvable:$true] %s48
      %s50 = sshll.u32 [#allocation7], 4
      %s51 = int_to_ptr.vmem [resolvable:$true] %s50
      %53 = dma.hbm_to_vmem [thread:$0]  %s49, 32, %s51, [#allocation6]
    $region13: #{tpu_custom_call.1} parent=1 // pred_fallthru
      _
    // Predicated region
    $region14: #{tpu_custom_call.1} parent=1 // pred_check
      _
    $region15: #{tpu_custom_call.1} parent=1 // pred_check_branch
      %55 = sbr.rel (0) target = $region17
    $region16: #{tpu_custom_call.1} parent=1 // pred_region
      %57 = vsyncadd [#allocation9], 0
      %s58 = sshll.u32 %s3, 4
      %s59 = int_to_ptr.hbm [resolvable:$true] %s58
      %s60 = sshll.u32 [#allocation8], 4
      %s61 = int_to_ptr.vmem [resolvable:$true] %s60
      %66 = dma.hbm_to_vmem [thread:$0]  %s59, 2048, %s61, [#allocation9], 64, 64, 4
    $region17: #{tpu_custom_call.1} parent=1 // pred_fallthru
      _
    // Predicated region
    $region18: #{tpu_custom_call.1} parent=1 // pred_check
      _
    $region19: #{tpu_custom_call.1} parent=1 // pred_check_branch
      %68 = sbr.rel (0) target = $region21
    $region20: #{tpu_custom_call.1} parent=1 // pred_region
      _
    $region21: #{tpu_custom_call.1} parent=1 // pred_fallthru
      _
    // Predicated region
    $region22: #{tpu_custom_call.1} parent=1 // pred_check
      _
    $region23: #{tpu_custom_call.1} parent=1 // pred_check_branch
      %70 = sbr.rel (0) target = $region25
    $region24: #{tpu_custom_call.1} parent=1 // pred_region
      %72 = vsyncadd [#allocation9], 0
      %s73 = sshll.u32 %s5, 4
      %s74 = int_to_ptr.hbm [resolvable:$true] %s73
      %s75 = sshll.u32 [#allocation10], 4
      %s76 = int_to_ptr.vmem [resolvable:$true] %s75
      %81 = dma.hbm_to_vmem [thread:$0]  %s74, 1024, %s76, [#allocation9], 64, 64, 4
    $region25: #{tpu_custom_call.1} parent=1 // pred_fallthru
      _
    // Predicated region
    $region26: #{tpu_custom_call.1} parent=1 // pred_check
      _
    $region27: #{tpu_custom_call.1} parent=1 // pred_check_branch
      %83 = sbr.rel (0) target = $region29
    $region28: #{tpu_custom_call.1} parent=1 // pred_region
      _
    $region29: #{tpu_custom_call.1} parent=1 // pred_fallthru
      _
    // Predicated region
    $region30: #{tpu_custom_call.1} parent=1 // pred_check
      _
    $region31: #{tpu_custom_call.1} parent=1 // pred_check_branch
      %85 = sbr.rel (0) target = $region33
    $region32: #{tpu_custom_call.1} parent=1 // pred_region
      %87 = vsyncadd [#allocation12], 0
      %s88 = sshll.u32 %s7, 4
      %s89 = int_to_ptr.hbm [resolvable:$true] %s88
      %s90 = sshll.u32 [#allocation11], 4
      %s91 = int_to_ptr.vmem [resolvable:$true] %s90
      %96 = dma.hbm_to_vmem [thread:$0]  %s89, 1024, %s91, [#allocation12], 64, 64, 4
    $region33: #{tpu_custom_call.1} parent=1 // pred_fallthru
      _
    // Predicated region
    $region34: #{tpu_custom_call.1} parent=1 // pred_check
      _
    $region35: #{tpu_custom_call.1} parent=1 // pred_check_branch
      %98 = sbr.rel (0) target = $region37
    $region36: #{tpu_custom_call.1} parent=1 // pred_region
      _
    $region37: #{tpu_custom_call.1} parent=1 // pred_fallthru
      _
    // Predicated region
    $region38: #{tpu_custom_call.1} parent=1 // pred_check
      _
    $region39: #{tpu_custom_call.1} parent=1 // pred_check_branch
      %100 = sbr.rel (0) target = $region41
    $region40: #{tpu_custom_call.1} parent=1 // pred_region
      %102 = dma.done [#allocation3], 128
    $region41: #{tpu_custom_call.1} parent=1 // pred_fallthru
      _
    // Predicated region
    $region42: #{tpu_custom_call.1} parent=1 // pred_check
      _
    $region43: #{tpu_custom_call.1} parent=1 // pred_check_branch
      %104 = sbr.rel (0) target = $region45
    $region44: #{tpu_custom_call.1} parent=1 // pred_region
      %106 = dma.done [#allocation6], 256
    $region45: #{tpu_custom_call.1} parent=1 // pred_fallthru
      _
    // Predicated region
    $region46: #{tpu_custom_call.1} parent=1 // pred_check
      _
    $region47: #{tpu_custom_call.1} parent=1 // pred_check_branch
      %108 = sbr.rel (0) target = $region49
    $region48: #{tpu_custom_call.1} parent=1 // pred_region
      %110 = dma.done [#allocation6], 32
    $region49: #{tpu_custom_call.1} parent=1 // pred_fallthru
      _
    // Predicated region
    $region50: #{tpu_custom_call.1} parent=1 // pred_check
      _
    $region51: #{tpu_custom_call.1} parent=1 // pred_check_branch
      %112 = sbr.rel (0) target = $region53
    $region52: #{tpu_custom_call.1} parent=1 // pred_region
      %114 = dma.done [#allocation9], 2048
    $region53: #{tpu_custom_call.1} parent=1 // pred_fallthru
      _
    // Predicated region
    $region54: #{tpu_custom_call.1} parent=1 // pred_check
      _
    $region55: #{tpu_custom_call.1} parent=1 // pred_check_branch
      %116 = sbr.rel (0) target = $region57
    $region56: #{tpu_custom_call.1} parent=1 // pred_region
      %118 = dma.done [#allocation9], 1024
    $region57: #{tpu_custom_call.1} parent=1 // pred_fallthru
      _
    // Predicated region
    $region58: #{tpu_custom_call.1} parent=1 // pred_check
      _
    $region59: #{tpu_custom_call.1} parent=1 // pred_check_branch
      %120 = sbr.rel (0) target = $region61
    $region60: #{tpu_custom_call.1} parent=1 // pred_region
      %122 = dma.done [#allocation12], 1024
    $region61: #{tpu_custom_call.1} parent=1 // pred_fallthru
      _
    %v124 = vld [vmem:[#allocation2] sm:$0xff]
    %v125 = vpack.c.bf16 %v124, %v124
    %v126 = vld [vmem:[#allocation5] sm:$0xff]
    %v127 = vld [vmem:[#allocation5 + $0x8] sm:$0xff]
    %v128 = vld [vmem:[#allocation7] sm:$0x3]
    %v130 = vperm.slane %v128, 0
    %v131 = vperm.slane %v128, 1
    %v136 = vunpack.c.l.b16 %v126
    %v137 = vunpack.c.h.b16 %v126
    %v138 = vunpack.c.l.b16 %v127
    %v139 = vunpack.c.h.b16 %v127
    %v140 = vpack.c.b16 %v138, %v136
    %v141 = vpack.c.b16 %v139, %v137
    %vm144 = vcmask 130048
    %v146 = vsel %vm144, %v125, 0
    %148 = vmatpush.bf16.msra.mxu0 0
    %149 = vmatpush.bf16.msra.mxu0 0
    %150 = vmatpush.bf16.msra.mxu0 0
    %151 = vmatpush.bf16.msra.mxu0 0
    %152 = vmatpush.bf16.msra.mxu0 0
    %153 = vmatpush.bf16.msra.mxu0 0
    %154 = vmatpush.bf16.msra.mxu0 0
    %155 = vmatpush.bf16.msra.mxu0 %v140
    %156 = vmatmul.bf16.gmra.mxu0 %v146
    %v157 = vpop.f32.mrf.mxu0
    %v158 = vadd.f32 %v130, %v157
    %v159 = vpop.f32.mrf.mxu0
    %160 = vdwg.mxu0
    %161 = vmatpush.bf16.msra.mxu0 0
    %162 = vmatpush.bf16.msra.mxu0 0
    %163 = vmatpush.bf16.msra.mxu0 0
    %164 = vmatpush.bf16.msra.mxu0 0
    %165 = vmatpush.bf16.msra.mxu0 0
    %166 = vmatpush.bf16.msra.mxu0 0
    %167 = vmatpush.bf16.msra.mxu0 0
    %168 = vmatpush.bf16.msra.mxu0 %v141
    %169 = vmatmul.bf16.gmra.mxu0 %v146
    %v170 = vpop.f32.mrf.mxu0
    %v171 = vadd.f32 %v131, %v170
    %v172 = vpop.f32.mrf.mxu0
    %173 = vdwg.mxu0
    %v174 = vmax.f32 %v158, 0.0
    %v175 = vmax.f32 %v171, 0.0
    %v176 = vpack.c.bf16 %v174, %v174
    %v177 = vpack.c.bf16 %v175, %v175
    %v178 = vld [vmem:[#allocation8] sm:$0xf]
    %v179 = vld [vmem:[#allocation8 + $0x4] sm:$0xf]
    %v180 = vld [vmem:[#allocation8 + $0x8] sm:$0xf]
    %v181 = vld [vmem:[#allocation8 + $0xc] sm:$0xf]
    %v182 = vld [vmem:[#allocation8 + $0x10] sm:$0xf]
    %v183 = vld [vmem:[#allocation8 + $0x14] sm:$0xf]
    %v184 = vld [vmem:[#allocation8 + $0x18] sm:$0xf]
    %v185 = vld [vmem:[#allocation8 + $0x1c] sm:$0xf]
    %v186 = vld [vmem:[#allocation8 + $0x20] sm:$0xf]
    %v187 = vld [vmem:[#allocation8 + $0x24] sm:$0xf]
    %v188 = vld [vmem:[#allocation8 + $0x28] sm:$0xf]
    %v189 = vld [vmem:[#allocation8 + $0x2c] sm:$0xf]
    %v190 = vld [vmem:[#allocation8 + $0x30] sm:$0xf]
    %v191 = vld [vmem:[#allocation8 + $0x34] sm:$0xf]
    %v192 = vld [vmem:[#allocation8 + $0x38] sm:$0xf]
    %v193 = vld [vmem:[#allocation8 + $0x3c] sm:$0xf]
    %v194 = vld [vmem:[#allocation8 + $0x40] sm:$0xf]
    %v195 = vld [vmem:[#allocation8 + $0x44] sm:$0xf]
    %v196 = vld [vmem:[#allocation8 + $0x48] sm:$0xf]
    %v197 = vld [vmem:[#allocation8 + $0x4c] sm:$0xf]
    %v198 = vld [vmem:[#allocation8 + $0x50] sm:$0xf]
    %v199 = vld [vmem:[#allocation8 + $0x54] sm:$0xf]
    %v200 = vld [vmem:[#allocation8 + $0x58] sm:$0xf]
    %v201 = vld [vmem:[#allocation8 + $0x5c] sm:$0xf]
    %v202 = vld [vmem:[#allocation8 + $0x60] sm:$0xf]
    %v203 = vld [vmem:[#allocation8 + $0x64] sm:$0xf]
    %v204 = vld [vmem:[#allocation8 + $0x68] sm:$0xf]
    %v205 = vld [vmem:[#allocation8 + $0x6c] sm:$0xf]
    %v206 = vld [vmem:[#allocation8 + $0x70] sm:$0xf]
    %v207 = vld [vmem:[#allocation8 + $0x74] sm:$0xf]
    %v208 = vld [vmem:[#allocation8 + $0x78] sm:$0xf]
    %v209 = vld [vmem:[#allocation8 + $0x7c] sm:$0xf]
    %v210 = vld [vmem:[%s4] sm:$0x1]
    %v212 = vperm.slane %v210, 0
    %v246 = vunpack.c.l.b16 %v178
    %v247 = vunpack.c.l.b16 %v179
    %v248 = vunpack.c.l.b16 %v180
    %v249 = vunpack.c.l.b16 %v181
    %v250 = vunpack.c.l.b16 %v182
    %v251 = vunpack.c.l.b16 %v183
    %v252 = vunpack.c.l.b16 %v184
    %v253 = vunpack.c.l.b16 %v185
    %v254 = vunpack.c.l.b16 %v186
    %v255 = vunpack.c.l.b16 %v187
    %v256 = vunpack.c.l.b16 %v188
    %v257 = vunpack.c.l.b16 %v189
    %v258 = vunpack.c.l.b16 %v190
    %v259 = vunpack.c.l.b16 %v191
    %v260 = vunpack.c.l.b16 %v192
    %v261 = vunpack.c.l.b16 %v193
    %v262 = vunpack.c.l.b16 %v194
    %v263 = vunpack.c.l.b16 %v195
    %v264 = vunpack.c.l.b16 %v196
    %v265 = vunpack.c.l.b16 %v197
    %v266 = vunpack.c.l.b16 %v198
    %v267 = vunpack.c.l.b16 %v199
    %v268 = vunpack.c.l.b16 %v200
    %v269 = vunpack.c.l.b16 %v201
    %v270 = vunpack.c.l.b16 %v202
    %v271 = vunpack.c.l.b16 %v203
    %v272 = vunpack.c.l.b16 %v204
    %v273 = vunpack.c.l.b16 %v205
    %v274 = vunpack.c.l.b16 %v206
    %v275 = vunpack.c.l.b16 %v207
    %v276 = vunpack.c.l.b16 %v208
    %v277 = vunpack.c.l.b16 %v209
    %v278 = vpack.c.b16 %v247, %v246
    %v279 = vpack.c.b16 %v249, %v248
    %v280 = vpack.c.b16 %v251, %v250
    %v281 = vpack.c.b16 %v253, %v252
    %v282 = vpack.c.b16 %v255, %v254
    %v283 = vpack.c.b16 %v257, %v256
    %v284 = vpack.c.b16 %v259, %v258
    %v285 = vpack.c.b16 %v261, %v260
    %v286 = vpack.c.b16 %v263, %v262
    %v287 = vpack.c.b16 %v265, %v264
    %v288 = vpack.c.b16 %v267, %v266
    %v289 = vpack.c.b16 %v269, %v268
    %v290 = vpack.c.b16 %v271, %v270
    %v291 = vpack.c.b16 %v273, %v272
    %v292 = vpack.c.b16 %v275, %v274
    %v293 = vpack.c.b16 %v277, %v276
    %310 = vmatpush.bf16.msra.mxu0 %v285
    %311 = vmatpush.bf16.msra.mxu0 %v284
    %312 = vmatpush.bf16.msra.mxu0 %v283
    %313 = vmatpush.bf16.msra.mxu0 %v282
    %314 = vmatpush.bf16.msra.mxu0 %v281
    %315 = vmatpush.bf16.msra.mxu0 %v280
    %316 = vmatpush.bf16.msra.mxu0 %v279
    %317 = vmatpush.bf16.msra.mxu0 %v278
    %318 = vmatmul.bf16.gmra.mxu0 %v176
    %v319 = vpop.f32.mrf.mxu0
    %v320 = vadd.f32 %v212, %v319
    %v321 = vpop.f32.mrf.mxu0
    %322 = vdwg.mxu0
    %323 = vmatpush.bf16.msra.mxu0 %v293
    %324 = vmatpush.bf16.msra.mxu0 %v292
    %325 = vmatpush.bf16.msra.mxu0 %v291
    %326 = vmatpush.bf16.msra.mxu0 %v290
    %327 = vmatpush.bf16.msra.mxu0 %v289
    %328 = vmatpush.bf16.msra.mxu0 %v288
    %329 = vmatpush.bf16.msra.mxu0 %v287
    %330 = vmatpush.bf16.msra.mxu0 %v286
    %331 = vmatmul.bf16.gmra.mxu0 %v177
    %v332 = vpop.f32.mrf.mxu0
    %v333 = vadd.f32 %v320, %v332
    %v334 = vpop.f32.mrf.mxu0
    %335 = vdwg.mxu0
    %v336 = vmax.f32 %v333, 0.0
    %v337 = vpack.c.bf16 %v336, %v336
    %v338 = vld [vmem:[#allocation10] sm:$0xf]
    %v339 = vld [vmem:[#allocation10 + $0x4] sm:$0xf]
    %v340 = vld [vmem:[#allocation10 + $0x8] sm:$0xf]
    %v341 = vld [vmem:[#allocation10 + $0xc] sm:$0xf]
    %v342 = vld [vmem:[#allocation10 + $0x10] sm:$0xf]
    %v343 = vld [vmem:[#allocation10 + $0x14] sm:$0xf]
    %v344 = vld [vmem:[#allocation10 + $0x18] sm:$0xf]
    %v345 = vld [vmem:[#allocation10 + $0x1c] sm:$0xf]
    %v346 = vld [vmem:[#allocation10 + $0x20] sm:$0xf]
    %v347 = vld [vmem:[#allocation10 + $0x24] sm:$0xf]
    %v348 = vld [vmem:[#allocation10 + $0x28] sm:$0xf]
    %v349 = vld [vmem:[#allocation10 + $0x2c] sm:$0xf]
    %v350 = vld [vmem:[#allocation10 + $0x30] sm:$0xf]
    %v351 = vld [vmem:[#allocation10 + $0x34] sm:$0xf]
    %v352 = vld [vmem:[#allocation10 + $0x38] sm:$0xf]
    %v353 = vld [vmem:[#allocation10 + $0x3c] sm:$0xf]
    %v354 = vld [vmem:[%s6] sm:$0x1]
    %v356 = vperm.slane %v354, 0
    %v374 = vunpack.c.l.b16 %v338
    %v375 = vunpack.c.l.b16 %v339
    %v376 = vunpack.c.l.b16 %v340
    %v377 = vunpack.c.l.b16 %v341
    %v378 = vunpack.c.l.b16 %v342
    %v379 = vunpack.c.l.b16 %v343
    %v380 = vunpack.c.l.b16 %v344
    %v381 = vunpack.c.l.b16 %v345
    %v382 = vunpack.c.l.b16 %v346
    %v383 = vunpack.c.l.b16 %v347
    %v384 = vunpack.c.l.b16 %v348
    %v385 = vunpack.c.l.b16 %v349
    %v386 = vunpack.c.l.b16 %v350
    %v387 = vunpack.c.l.b16 %v351
    %v388 = vunpack.c.l.b16 %v352
    %v389 = vunpack.c.l.b16 %v353
    %v390 = vpack.c.b16 %v375, %v374
    %v391 = vpack.c.b16 %v377, %v376
    %v392 = vpack.c.b16 %v379, %v378
    %v393 = vpack.c.b16 %v381, %v380
    %v394 = vpack.c.b16 %v383, %v382
    %v395 = vpack.c.b16 %v385, %v384
    %v396 = vpack.c.b16 %v387, %v386
    %v397 = vpack.c.b16 %v389, %v388
    %406 = vmatpush.bf16.msra.mxu0 %v397
    %407 = vmatpush.bf16.msra.mxu0 %v396
    %408 = vmatpush.bf16.msra.mxu0 %v395
    %409 = vmatpush.bf16.msra.mxu0 %v394
    %410 = vmatpush.bf16.msra.mxu0 %v393
    %411 = vmatpush.bf16.msra.mxu0 %v392
    %412 = vmatpush.bf16.msra.mxu0 %v391
    %413 = vmatpush.bf16.msra.mxu0 %v390
    %414 = vmatmul.bf16.gmra.mxu0 %v337
    %v415 = vpop.f32.mrf.mxu0
    %v416 = vadd.f32 %v356, %v415
    %v417 = vpop.f32.mrf.mxu0
    %418 = vdwg.mxu0
    %v419 = vmax.f32 %v416, 0.0
    %v420 = vpack.c.bf16 %v419, %v419
    %v421 = vld [vmem:[#allocation11] sm:$0xf]
    %v422 = vld [vmem:[#allocation11 + $0x4] sm:$0xf]
    %v423 = vld [vmem:[#allocation11 + $0x8] sm:$0xf]
    %v424 = vld [vmem:[#allocation11 + $0xc] sm:$0xf]
    %v425 = vld [vmem:[#allocation11 + $0x10] sm:$0xf]
    %v426 = vld [vmem:[#allocation11 + $0x14] sm:$0xf]
    %v427 = vld [vmem:[#allocation11 + $0x18] sm:$0xf]
    %v428 = vld [vmem:[#allocation11 + $0x1c] sm:$0xf]
    %v429 = vld [vmem:[#allocation11 + $0x20] sm:$0xf]
    %v430 = vld [vmem:[#allocation11 + $0x24] sm:$0xf]
    %v431 = vld [vmem:[#allocation11 + $0x28] sm:$0xf]
    %v432 = vld [vmem:[#allocation11 + $0x2c] sm:$0xf]
    %v433 = vld [vmem:[#allocation11 + $0x30] sm:$0xf]
    %v434 = vld [vmem:[#allocation11 + $0x34] sm:$0xf]
    %v435 = vld [vmem:[#allocation11 + $0x38] sm:$0xf]
    %v436 = vld [vmem:[#allocation11 + $0x3c] sm:$0xf]
    %v437 = vld [vmem:[%s8] sm:$0x1]
    %v439 = vperm.slane %v437, 0
    %v457 = vunpack.c.l.b16 %v421
    %v458 = vunpack.c.l.b16 %v422
    %v459 = vunpack.c.l.b16 %v423
    %v460 = vunpack.c.l.b16 %v424
    %v461 = vunpack.c.l.b16 %v425
    %v462 = vunpack.c.l.b16 %v426
    %v463 = vunpack.c.l.b16 %v427
    %v464 = vunpack.c.l.b16 %v428
    %v465 = vunpack.c.l.b16 %v429
    %v466 = vunpack.c.l.b16 %v430
    %v467 = vunpack.c.l.b16 %v431
    %v468 = vunpack.c.l.b16 %v432
    %v469 = vunpack.c.l.b16 %v433
    %v470 = vunpack.c.l.b16 %v434
    %v471 = vunpack.c.l.b16 %v435
    %v472 = vunpack.c.l.b16 %v436
    %v473 = vpack.c.b16 %v458, %v457
    %v474 = vpack.c.b16 %v460, %v459
    %v475 = vpack.c.b16 %v462, %v461
    %v476 = vpack.c.b16 %v464, %v463
    %v477 = vpack.c.b16 %v466, %v465
    %v478 = vpack.c.b16 %v468, %v467
    %v479 = vpack.c.b16 %v470, %v469
    %v480 = vpack.c.b16 %v472, %v471
    %489 = vmatpush.bf16.msra.mxu0 %v480
    %490 = vmatpush.bf16.msra.mxu0 %v479
    %491 = vmatpush.bf16.msra.mxu0 %v478
    %492 = vmatpush.bf16.msra.mxu0 %v477
    %493 = vmatpush.bf16.msra.mxu0 %v476
    %494 = vmatpush.bf16.msra.mxu0 %v475
    %495 = vmatpush.bf16.msra.mxu0 %v474
    %496 = vmatpush.bf16.msra.mxu0 %v473
    %497 = vmatmul.bf16.gmra.mxu0 %v420
    %v498 = vpop.f32.mrf.mxu0
    %v499 = vadd.f32 %v439, %v498
    %v500 = vpop.f32.mrf.mxu0
    %501 = vdwg.mxu0
    %502 = vst [vmem:[#allocation13] sm:$0xff] %v499
    // Predicated region
    $region62: #{tpu_custom_call.1} parent=1 // pred_check
      _
    $region63: #{tpu_custom_call.1} parent=1 // pred_check_branch
      %504 = sbr.rel (0) target = $region65
    $region64: #{tpu_custom_call.1} parent=1 // pred_region
      %506 = vsyncadd [#allocation4], 0
      %s508 = sshll.u32 [#allocation13], 4
      %s509 = int_to_ptr.vmem [resolvable:$true] %s508
      %s510 = sshll.u32 %s9, 4
      %s511 = int_to_ptr.hbm [resolvable:$true] %s510
      %513 = dma.vmem_to_hbm [thread:$0]  %s509, 128, %s511, [#allocation4]
    $region65: #{tpu_custom_call.1} parent=1 // pred_fallthru
      _
    // Predicated region
    $region66: #{tpu_custom_call.1} parent=1 // pred_check
      _
    $region67: #{tpu_custom_call.1} parent=1 // pred_check_branch
      %515 = sbr.rel (0) target = $region69
    $region68: #{tpu_custom_call.1} parent=1 // pred_region
      %517 = dma.done [#allocation4], 128
    $region69: #{tpu_custom_call.1} parent=1 // pred_fallthru
      _
    %518 = vsyncpa [#allocation3], 1
    %519 = vsyncpa [#allocation6], 1
    %520 = vsyncpa [#allocation9], 1
    %521 = vsyncpa [#allocation12], 1
    %522 = vsyncpa [#allocation4], 1

</llo_original>
